<compile_context>
chip_gen: v7x
topology: tpu7x:2x2x1
jax: 0.10.0
libtpu: 0.0.40
codegen_flags: <defaults>
</compile_context>

<pallas_src>
import jax
import jax.numpy as jnp
from jax.experimental import pallas as pl
from jax.experimental.pallas import tpu as pltpu


def _actnorm_apply_kernel(x_ref, loc_ref, scale_ref, out_ref):
    # x_ref/out_ref: (1, C, T); loc_ref/scale_ref: (1, C, 1), resident in VMEM.
    out_ref[...] = scale_ref[...] * (x_ref[...] + loc_ref[...])


def _pick_lane_tile(hw: int, max_lanes: int = 1024) -> int:
    """Largest multiple of 128 that divides hw (<= max_lanes): lane-dense,
    unmasked loads/stores.  Falls back to the full dim when hw is not a
    multiple of 128 (a full-extent lane block is always legal)."""
    if hw % 128 != 0:
        return hw
    t = min(max_lanes, hw)
    t -= t % 128
    while t >= 128:
        if hw % t == 0:
            return t
        t -= 128
    return hw


def actnorm_apply(x3, loc3, scale3):
    """out = scale * (x + loc) on the (N, C, H*W) view, tiled along lanes."""
    n, c, hw = x3.shape
    t = _pick_lane_tile(hw)
    grid = (n, hw // t)
    return pl.pallas_call(
        _actnorm_apply_kernel,
        grid=grid,
        in_specs=[
            pl.BlockSpec((1, c, t), lambda i, j: (i, 0, j)),
            pl.BlockSpec((1, c, 1), lambda i, j: (0, 0, 0)),   # resident loc
            pl.BlockSpec((1, c, 1), lambda i, j: (0, 0, 0)),   # resident scale
        ],
        out_specs=pl.BlockSpec((1, c, t), lambda i, j: (i, 0, j)),
        out_shape=jax.ShapeDtypeStruct((n, c, hw), x3.dtype),
        compiler_params=pltpu.CompilerParams(
            dimension_semantics=("parallel", "parallel")),
    )(x3, loc3, scale3)


class ActNorm:
    """JAX/Pallas port of the PyTorch ActNorm module (forward only)."""

    def __init__(self, in_channel, logdet=True):
        self.in_channel = in_channel
        self.logdet = logdet
        self.loc = jnp.zeros((1, in_channel, 1, 1), jnp.float32)
        self.scale = jnp.ones((1, in_channel, 1, 1), jnp.float32)
        # Mirrors the `initialized` uint8 buffer.  Host-side flag: the DDI
        # branch is selected at dispatch time, like PyTorch's .item() check.
        self.initialized = False

    def initialize(self, x):
        # Data-dependent init, runs exactly once.  Two-pass stats (mean first,
        # then sum((x-mean)^2)) in plain JAX per the review: numerically
        # faithful to torch.std (unbiased) and keeps the tiled kernel's VMEM
        # footprint flat instead of holding x + diff + out resident.
        n, _, h, w = x.shape
        m = n * h * w
        mean = jnp.mean(x, axis=(0, 2, 3), keepdims=True)                  # (1,C,1,1)
        var = jnp.sum((x - mean) ** 2, axis=(0, 2, 3), keepdims=True) / max(m - 1, 1)
        std = jnp.sqrt(var)
        self.loc = -mean                                                   # loc.copy_(-mean)
        self.scale = 1.0 / (std + 1e-6)                                    # scale.copy_(1/(std+1e-6))

    def forward(self, x):
        n, c, h, w = x.shape
        assert c == self.in_channel
        if not self.initialized:
            self.initialize(x)
            self.initialized = True

        hw = h * w
        out = actnorm_apply(
            x.reshape(n, c, hw),            # free view — no HBM transpose
            self.loc.reshape(1, c, 1),
            self.scale.reshape(1, c, 1),
        ).reshape(n, c, h, w)

        # logdet is O(C) work on the stored scale — hoisted out of the kernel.
        logdet = float(h * w) * jnp.sum(jnp.log(jnp.abs(self.scale)))
        if self.logdet:
            return out, logdet
        return out


def _actnorm_reference(x):
    """Pure-JAX reference of the PyTorch first-call forward (DDI + apply)."""
    _, c, h, w = x.shape
    flat = jnp.transpose(x, (1, 0, 2, 3)).reshape(c, -1)
    mean = flat.mean(axis=1)
    std = flat.std(axis=1, ddof=1)
    loc = (-mean).reshape(1, c, 1, 1)
    scale = (1.0 / (std + 1e-6)).reshape(1, c, 1, 1)
    out = scale * (x + loc)
    logdet = h * w * jnp.sum(jnp.log(jnp.abs(scale)))
    return out, logdet


if __name__ == "__main__":
    key = jax.random.PRNGKey(0)
    # small shapes consistent with the module: batch=2, channels=4, spatial=16
    x = 2.0 * jax.random.normal(key, (2, 4, 16, 16), jnp.float32) + 0.5

    actnorm = ActNorm(in_channel=4, logdet=True)

    # first call: data-dependent init + tiled forward
    out1, logdet1 = actnorm.forward(x)
    # second call: already-initialized path using the stored loc/scale
    out2, logdet2 = actnorm.forward(x)
    (out1, logdet1, out2, logdet2) = jax.block_until_ready(
        (out1, logdet1, out2, logdet2))

    ref_out, ref_logdet = _actnorm_reference(x)

    assert bool(jnp.all(jnp.isfinite(out1))) and bool(jnp.isfinite(logdet1))
    assert jnp.allclose(out1, ref_out, rtol=1e-4, atol=1e-4), "DDI forward mismatch"
    assert jnp.allclose(logdet1, ref_logdet, rtol=1e-4, atol=1e-3), "logdet mismatch"
    assert jnp.allclose(out2, out1, rtol=1e-4, atol=1e-4), "apply-path mismatch"
    assert jnp.allclose(logdet2, logdet1, rtol=1e-4, atol=1e-3), "apply logdet mismatch"

    print("KERNEL_OK")
</pallas_src>

<mosaic_0001>
module attributes {stable_mosaic.version = 11 : i64} {
  func.func @_actnorm_apply_kernel(%arg0: i32, %arg1: i32, %arg2: memref<1x4x256xf32, #tpu.memory_space<vmem>>, %arg3: memref<1x4x1xf32, #tpu.memory_space<vmem>>, %arg4: memref<1x4x1xf32, #tpu.memory_space<vmem>>, %arg5: memref<1x4x256xf32, #tpu.memory_space<vmem>>) attributes {dimension_semantics = [#tpu.dimension_semantics<parallel>, #tpu.dimension_semantics<parallel>], iteration_bounds = array<i64: 2, 1>, scalar_prefetch = 0 : i64, scratch_operands = 0 : i64, tpu.core_type = #tpu.core_type<tc>, window_params = [{transform_indices = @transform_0, window_bounds = array<i64: 1, 4, 256>}, {pipeline_mode = #tpu.pipeline_mode<synchronous>, transform_indices = @transform_1, window_bounds = array<i64: 1, 4, 1>}, {pipeline_mode = #tpu.pipeline_mode<synchronous>, transform_indices = @transform_2, window_bounds = array<i64: 1, 4, 1>}, {transform_indices = @transform_3, window_bounds = array<i64: 1, 4, 256>}]} {
    %c0 = arith.constant 0 : index
    %c0_0 = arith.constant 0 : index
    %c0_1 = arith.constant 0 : index
    %0 = vector.load %arg4[%c0, %c0_0, %c0_1] : memref<1x4x1xf32, #tpu.memory_space<vmem>>, vector<1x4x1xf32>
    %c0_2 = arith.constant 0 : index
    %c0_3 = arith.constant 0 : index
    %c0_4 = arith.constant 0 : index
    %1 = vector.load %arg2[%c0_2, %c0_3, %c0_4] : memref<1x4x256xf32, #tpu.memory_space<vmem>>, vector<1x4x256xf32>
    %c0_5 = arith.constant 0 : index
    %c0_6 = arith.constant 0 : index
    %c0_7 = arith.constant 0 : index
    %2 = vector.load %arg3[%c0_5, %c0_6, %c0_7] : memref<1x4x1xf32, #tpu.memory_space<vmem>>, vector<1x4x1xf32>
    %3 = vector.broadcast %2 : vector<1x4x1xf32> to vector<1x4x256xf32>
    %4 = arith.addf %1, %3 : vector<1x4x256xf32>
    %5 = vector.broadcast %0 : vector<1x4x1xf32> to vector<1x4x256xf32>
    %6 = arith.mulf %5, %4 : vector<1x4x256xf32>
    %c0_8 = arith.constant 0 : index
    %c0_9 = arith.constant 0 : index
    %c0_10 = arith.constant 0 : index
    %7 = vector.load %arg5[%c0_8, %c0_9, %c0_10] : memref<1x4x256xf32, #tpu.memory_space<vmem>>, vector<1x4x256xf32>
    tpu.vector_store %arg5[%c0_8, %c0_9, %c0_10], %6 {strides = array<i32>} : memref<1x4x256xf32, #tpu.memory_space<vmem>>, vector<1x4x256xf32>,
    return
  }
  func.func @transform_0(%arg0: i32, %arg1: i32) -> (i32, i32, i32) {
    %c0_i32 = arith.constant 0 : i32
    %c0_i32_0 = arith.constant 0 : i32
    return %arg0, %c0_i32, %arg1 : i32, i32, i32
  }
  func.func @transform_1(%arg0: i32, %arg1: i32) -> (i32, i32, i32) {
    %c0_i32 = arith.constant 0 : i32
    %c0_i32_0 = arith.constant 0 : i32
    %c0_i32_1 = arith.constant 0 : i32
    %c0_i32_2 = arith.constant 0 : i32
    return %c0_i32, %c0_i32_0, %c0_i32_1 : i32, i32, i32
  }
  func.func @transform_2(%arg0: i32, %arg1: i32) -> (i32, i32, i32) {
    %c0_i32 = arith.constant 0 : i32
    %c0_i32_0 = arith.constant 0 : i32
    %c0_i32_1 = arith.constant 0 : i32
    %c0_i32_2 = arith.constant 0 : i32
    return %c0_i32, %c0_i32_0, %c0_i32_1 : i32, i32, i32
  }
  func.func @transform_3(%arg0: i32, %arg1: i32) -> (i32, i32, i32) {
    %c0_i32 = arith.constant 0 : i32
    %c0_i32_0 = arith.constant 0 : i32
    return %arg0, %c0_i32, %arg1 : i32, i32, i32
  }
}

</mosaic_0001>

<llo_original>
// kernel: tpu_custom_call.1
$region0: #{tpu_custom_call.1}
  #allocation0 [shape = 'u32[]', space=smem, size = 0x4, offset = 0x4, fixed_abs, tag = 'smem constant byte address 0x4 - core index']
  #allocation1 [shape = 'u32[144,128]{1,0:T(1,128)}', space=vmem, size = 0x12000, scoped, tag = 'internal scratch']
  %s0 = inlined_call_operand.hbm [shape: f32[2,4,256], index: 0, kind: input, shape index: {}]
  %s1 = inlined_call_operand.vmem [shape: f32[1,4,1], index: 1, kind: input, shape index: {}]
  %s2 = inlined_call_operand.vmem [shape: f32[1,4,1], index: 2, kind: input, shape index: {}]
  %s3 = inlined_call_operand.hbm [shape: f32[2,4,256], index: 3, kind: output, shape index: {}]
  %s4 = sld [smem:[#allocation0]]
  $region49: #{tpu_custom_call.1} parent=0
    _
  %s6 = ssub.s32 1, %s4
  %s7 = scalar_select 0, %s6, %s4
  $region1: #{tpu_custom_call.1} parent=0
    #allocation2 [shape = 'u8[8192]{0}', space=vmem, size = 0x2000, scoped, tag = 'input window, operand 0']
    #allocation3 [shape = 's32[2]{0}', space=sflag, size = 0x8, scoped, tag = 'scoped memory for tpu_custom_call.1']
    #allocation4 [shape = 's32[2]{0}', space=sflag, size = 0x8, scoped, tag = 'scoped memory for tpu_custom_call.1']
    #allocation5 [shape = 'u8[8192]{0}', space=vmem, size = 0x2000, scoped, tag = 'output window, operand 0']
    %8 = vsyncpa [#allocation3], 0
    %s9 = scalar_lea.sflag [#allocation3], 1
    %10 = vsyncpa %s9, 0
    %11 = vsyncpa [#allocation4], 0
    %s12 = scalar_lea.sflag [#allocation4], 1
    %13 = vsyncpa %s12, 0
    loop: start=0, step=1, limit=4
    $region2: #{tpu_custom_call.1} parent=1 // loop_pre_header
      _
    $region3: #{tpu_custom_call.1} parent=1 // loop_header
      %s15 = sphi 0, %s19
      %p16 = scmp.ge.s32.totalorder %s15, 4
      %s22 = sphi 0, %s34
      %s23 = sphi 0, %s30
      %s24 = sphi 0, %s22
      %s25 = sphi 0, %s23
      %s26 = sphi 0, %s24
      %s27 = sphi 0, %s25
      %s39 = sphi 0, %s41
      %s42 = sphi 0, %s39
      %s43 = sphi 0, %s42
      %s59 = sphi 0, %s43
      %s63 = sphi 0, %s63
      %s65 = sphi 0, %s63
      %s66 = sphi 0, %s65
      %s80 = sphi 0, %s66
      %s84 = sphi 0, %s84
      %s86 = sphi 0, %s84
      %s87 = sphi 0, %s86
      %s101 = sphi 0, %s87
      %s109 = sphi 0, %s111
      %s112 = sphi 0, %s109
      %s113 = sphi 0, %s112
      %s129 = sphi 0, %s113
    $region4: #{tpu_custom_call.1} parent=1 // loop_header_branch
      %18 = sbr.rel (%p16) target = $region8
    $region5: #{tpu_custom_call.1} parent=1 // loop_body
      %s20 = ssub.s32 %s15, 1
      %s21 = ssub.s32 %s15, 2
      %s28 = sadd.s32 1, %s23
      %p29 = scmp.ge.s32.totalorder %s28, 1
      %s30 = scalar_select %p29, 0, %s28
      %s31 = sadd.s32 1, %s22
      %s32 = scalar_select %p29, %s31, %s22
      %p33 = scmp.ge.s32.totalorder %s32, 2
      %s34 = scalar_select %p33, 0, %s32
      %s35 = ssub.s32 %s22, %s34
      %s36 = ssub.s32 %s23, %s30
      %s37 = sor.u32 %s35, %s36
      %p38 = scmp.eq.s32.totalorder %s37, 0
      %s40 = sadd.s32 %s39, 1
      %s41 = scalar_select %p38, %s39, %s40
      %p44 = pneg %p38
      %p45 = scmp.eq.s32.totalorder %s15, 1
      %p46 = por %p44, %p45
      %p47 = scmp.ne.s32.totalorder %s39, %s42
      %p48 = scmp.eq.s32.totalorder %s15, 0
      %p49 = por %p47, %p48
      %p50 = scmp.ne.s32.totalorder %s39, %s42
      %p51 = scmp.eq.s32.totalorder %s20, 1
      %p52 = por %p50, %p51
      %p53 = scmp.ne.s32.totalorder %s42, %s43
      %p54 = scmp.eq.s32.totalorder %s20, 0
      %p55 = por %p53, %p54
      %p56 = scmp.ne.s32.totalorder %s42, %s43
      %p57 = scmp.eq.s32.totalorder %s21, 1
      %p58 = por %p56, %p57
      %p60 = scmp.ne.s32.totalorder %s43, %s59
      %p61 = scmp.eq.s32.totalorder %s21, 0
      %p62 = por %p60, %p61
      %s64 = sadd.s32 %s63, 1
      %p67 = scmp.eq.s32.totalorder %s15, 1
      %p68 = scmp.ne.s32.totalorder %s63, %s65
      %p69 = scmp.eq.s32.totalorder %s15, 0
      %p70 = por %p68, %p69
      %p71 = scmp.ne.s32.totalorder %s63, %s65
      %p72 = scmp.eq.s32.totalorder %s20, 1
      %p73 = por %p71, %p72
      %p74 = scmp.ne.s32.totalorder %s65, %s66
      %p75 = scmp.eq.s32.totalorder %s20, 0
      %p76 = por %p74, %p75
      %p77 = scmp.ne.s32.totalorder %s65, %s66
      %p78 = scmp.eq.s32.totalorder %s21, 1
      %p79 = por %p77, %p78
      %p81 = scmp.ne.s32.totalorder %s66, %s80
      %p82 = scmp.eq.s32.totalorder %s21, 0
      %p83 = por %p81, %p82
      %s85 = sadd.s32 %s84, 1
      %p88 = scmp.eq.s32.totalorder %s15, 1
      %p89 = scmp.ne.s32.totalorder %s84, %s86
      %p90 = scmp.eq.s32.totalorder %s15, 0
      %p91 = por %p89, %p90
      %p92 = scmp.ne.s32.totalorder %s84, %s86
      %p93 = scmp.eq.s32.totalorder %s20, 1
      %p94 = por %p92, %p93
      %p95 = scmp.ne.s32.totalorder %s86, %s87
      %p96 = scmp.eq.s32.totalorder %s20, 0
      %p97 = por %p95, %p96
      %p98 = scmp.ne.s32.totalorder %s86, %s87
      %p99 = scmp.eq.s32.totalorder %s21, 1
      %p100 = por %p98, %p99
      %p102 = scmp.ne.s32.totalorder %s87, %s101
      %p103 = scmp.eq.s32.totalorder %s21, 0
      %p104 = por %p102, %p103
      %s105 = ssub.s32 %s22, %s34
      %s106 = ssub.s32 %s23, %s30
      %s107 = sor.u32 %s105, %s106
      %p108 = scmp.eq.s32.totalorder %s107, 0
      %s110 = sadd.s32 %s109, 1
      %s111 = scalar_select %p108, %s109, %s110
      %p114 = pneg %p108
      %p115 = scmp.eq.s32.totalorder %s15, 1
      %p116 = por %p114, %p115
      %p117 = scmp.ne.s32.totalorder %s109, %s112
      %p118 = scmp.eq.s32.totalorder %s15, 0
      %p119 = por %p117, %p118
      %p120 = scmp.ne.s32.totalorder %s109, %s112
      %p121 = scmp.eq.s32.totalorder %s20, 1
      %p122 = por %p120, %p121
      %p123 = scmp.ne.s32.totalorder %s112, %s113
      %p124 = scmp.eq.s32.totalorder %s20, 0
      %p125 = por %p123, %p124
      %p126 = scmp.ne.s32.totalorder %s112, %s113
      %p127 = scmp.eq.s32.totalorder %s21, 1
      %p128 = por %p126, %p127
      %p130 = scmp.ne.s32.totalorder %s113, %s129
      %p131 = scmp.eq.s32.totalorder %s21, 0
      %p132 = por %p130, %p131
      %p133 = scmp.le.s32.totalorder 1, %s15
      %p134 = scmp.lt.s32.totalorder %s15, 3
      %p135 = pnand %p133, %p134
      %p136 = pneg %p135
      // Predicated region
      $region9: #{tpu_custom_call.1} parent=5 // pred_check
        _
      $region10: #{tpu_custom_call.1} parent=5 // pred_check_branch
        %138 = sbr.rel (%p135) target = $region12
      $region11: #{tpu_custom_call.1} parent=5 // pred_region
        %s139 = ssub.s32 %s15, 1
        // Predicated region
        $region13: #{tpu_custom_call.1} parent=11 // pred_check
          %p140 = pneg %p76
        $region14: #{tpu_custom_call.1} parent=11 // pred_check_branch
          %142 = sbr.rel (%p140) target = $region16
        $region15: #{tpu_custom_call.1} parent=11 // pred_region
          _
        $region16: #{tpu_custom_call.1} parent=11 // pred_fallthru
          _
        // Predicated region
        $region17: #{tpu_custom_call.1} parent=11 // pred_check
          %p143 = pneg %p97
        $region18: #{tpu_custom_call.1} parent=11 // pred_check_branch
          %145 = sbr.rel (%p143) target = $region20
        $region19: #{tpu_custom_call.1} parent=11 // pred_region
          _
        $region20: #{tpu_custom_call.1} parent=11 // pred_fallthru
          _
      $region12: #{tpu_custom_call.1} parent=5 // pred_fallthru
        _
      %p146 = scmp.lt.s32.totalorder %s15, 2
      // Predicated region
      $region21: #{tpu_custom_call.1} parent=5 // pred_check
        %p147 = pneg %p146
      $region22: #{tpu_custom_call.1} parent=5 // pred_check_branch
        %149 = sbr.rel (%p147) target = $region24
      $region23: #{tpu_custom_call.1} parent=5 // pred_region
        // Predicated region
        $region25: #{tpu_custom_call.1} parent=23 // pred_check
          %p150 = pneg %p49
        $region26: #{tpu_custom_call.1} parent=23 // pred_check_branch
          %152 = sbr.rel (%p150) target = $region28
        $region27: #{tpu_custom_call.1} parent=23 // pred_region
          %s153 = sand.u32 %s39, 1
          %s154 = scalar_lea.sflag [#allocation3], %s153
          %s155 = sand.u32 %s39, 1
          %s156 = smul.addr %s155, 8
          %s157 = scalar_lea.vmem [#allocation2], %s156
          %s158 = smul.u32 2, %s23
          %s160 = ssub.s32 128, 128
          %161 = vsyncadd %s154, %s160
          %s162 = smul.addr %s22, 2
          %s163 = sadd.s32 %s158, %s162
          %s164 = smul.addr %s163, 64
          %s165 = scalar_lea.hbm %s0, %s164
          %s167 = sshll.u32 %s157, 4
          %s168 = int_to_ptr.vmem [resolvable:$true] %s167
          %170 = dma.hbm_to_vmem [thread:$0]  %s165, 128, %s168, %s154
        $region28: #{tpu_custom_call.1} parent=23 // pred_fallthru
          _
      $region24: #{tpu_custom_call.1} parent=5 // pred_fallthru
        _
      %p171 = scmp.le.s32.totalorder 1, %s15
      %p172 = scmp.lt.s32.totalorder %s15, 3
      %p173 = pnand %p171, %p172
      %p174 = pneg %p173
      // Predicated region
      $region29: #{tpu_custom_call.1} parent=5 // pred_check
        _
      $region30: #{tpu_custom_call.1} parent=5 // pred_check_branch
        %176 = sbr.rel (%p173) target = $region32
      $region31: #{tpu_custom_call.1} parent=5 // pred_region
        %s177 = ssub.s32 %s15, 1
        %s178 = sand.u32 %s42, 1
        %s179 = scalar_lea.sflag [#allocation3], %s178
        %s180 = sand.u32 %s42, 1
        %s181 = smul.addr %s180, 8
        %s182 = scalar_lea.vmem [#allocation2], %s181
        // Predicated region
        $region33: #{tpu_custom_call.1} parent=31 // pred_check
          %p183 = pneg %p55
        $region34: #{tpu_custom_call.1} parent=31 // pred_check_branch
          %185 = sbr.rel (%p183) target = $region36
        $region35: #{tpu_custom_call.1} parent=31 // pred_region
          %186 = dma.done %s179, 128
        $region36: #{tpu_custom_call.1} parent=31 // pred_fallthru
          _
        %s187 = sand.u32 %s42, 1
        %s188 = scalar_lea.sflag [#allocation3], %s187
        %s189 = sand.u32 %s42, 1
        %s190 = smul.addr %s189, 8
        %s191 = scalar_lea.vmem [#allocation2], %s190
        %p192 = pneg %p55
        %p193 = pneg %p52
        %p194 = pneg %p76
        %p195 = pneg %p73
        %p196 = pneg %p97
        %p197 = pneg %p94
        %p198 = pneg %p125
        %p199 = pneg %p122
        %s200 = sand.u32 %s112, 1
        %s201 = scalar_lea.sflag [#allocation4], %s200
        %s202 = sand.u32 %s112, 1
        %s203 = smul.addr %s202, 8
        %s204 = scalar_lea.vmem [#allocation5], %s203
        %s205 = smul.u32 2, %s25
        %s206 = smul.u32 2, %s25
        %v207 = vld [vmem:[%s2] sm:$0xf]
        %v208 = vld [vmem:[%s182] sm:$0xff]
        %v209 = vld [vmem:[%s1] sm:$0xf]
        %211 = vset.pattern.permute.xlu0 0
        %212 = vperm.xlu0 %211, %v209
        %v213 = vpop.permute.xlu0 %212
        %v215 = vunpack.c.l.s4 839922192
        %v216 = vunpack.c.0.s8 %v215
        %v217 = vlaneseq
        %v218 = vshrl.u32 %v217, 7
        %v219 = vsub.s32 %v216, %v218
        %v220 = vrot.slane %v213, %v219
        %v222 = vadd.f32 %v208, %v220
        %224 = vset.pattern.permute.xlu0 0
        %225 = vperm.xlu0 %224, %v207
        %v226 = vpop.permute.xlu0 %225
        %v229 = vcombine.high %v222, %v222
        %v231 = vmul.f32 %v226, %v222
        %v232 = vmul.f32 %v226, %v229
        %v235 = vcombine.low %v231, %v232
        %237 = vst [vmem:[%s204] sm:$0xff] %v235
        %s238 = sand.u32 %s112, 1
        %s239 = scalar_lea.sflag [#allocation4], %s238
        %s240 = sand.u32 %s112, 1
        %s241 = smul.addr %s240, 8
        %s242 = scalar_lea.vmem [#allocation5], %s241
        // Predicated region
        $region37: #{tpu_custom_call.1} parent=31 // pred_check
          %p243 = pneg %p122
        $region38: #{tpu_custom_call.1} parent=31 // pred_check_branch
          %245 = sbr.rel (%p243) target = $region40
        $region39: #{tpu_custom_call.1} parent=31 // pred_region
          %s246 = smul.u32 2, %s25
          %s248 = ssub.s32 128, 128
          %249 = vsyncadd %s239, %s248
          %s250 = smul.addr %s24, 2
          %s251 = sadd.s32 %s246, %s250
          %s252 = smul.addr %s251, 64
          %s253 = scalar_lea.hbm %s3, %s252
          %s255 = sshll.u32 %s242, 4
          %s256 = int_to_ptr.vmem [resolvable:$true] %s255
          %258 = dma.vmem_to_hbm [thread:$0]  %s256, 128, %s253, %s239
        $region40: #{tpu_custom_call.1} parent=31 // pred_fallthru
          _
      $region32: #{tpu_custom_call.1} parent=5 // pred_fallthru
        _
      %p259 = scmp.le.s32.totalorder 2, %s15
      // Predicated region
      $region41: #{tpu_custom_call.1} parent=5 // pred_check
        %p260 = pneg %p259
      $region42: #{tpu_custom_call.1} parent=5 // pred_check_branch
        %262 = sbr.rel (%p260) target = $region44
      $region43: #{tpu_custom_call.1} parent=5 // pred_region
        %s263 = ssub.s32 %s15, 2
        // Predicated region
        $region45: #{tpu_custom_call.1} parent=43 // pred_check
          %p264 = pneg %p128
        $region46: #{tpu_custom_call.1} parent=43 // pred_check_branch
          %266 = sbr.rel (%p264) target = $region48
        $region47: #{tpu_custom_call.1} parent=43 // pred_region
          %s267 = sand.u32 %s113, 1
          %s268 = scalar_lea.sflag [#allocation4], %s267
          %s269 = sand.u32 %s113, 1
          %s270 = smul.addr %s269, 8
          %s271 = scalar_lea.vmem [#allocation5], %s270
          %272 = dma.done %s268, 128
        $region48: #{tpu_custom_call.1} parent=43 // pred_fallthru
          _
      $region44: #{tpu_custom_call.1} parent=5 // pred_fallthru
        _
    $region6: #{tpu_custom_call.1} parent=1 // loop_footer
      %s19 = sadd.s32 1, %s15
    $region7: #{tpu_custom_call.1} parent=1 // loop_footer_branch
      %14 = sbr.rel target = $region3
    $region8: #{tpu_custom_call.1} parent=1 // loop_exit
      _
    %273 = vsyncpa [#allocation3], 1
    %s274 = scalar_lea.sflag [#allocation3], 1
    %275 = vsyncpa %s274, 1
    %276 = vsyncpa [#allocation4], 1
    %s277 = scalar_lea.sflag [#allocation4], 1
    %278 = vsyncpa %s277, 1

</llo_original>
